<compile_context>
chip_gen: v7x
topology: tpu7x:2x2x1
jax: 0.10.0
libtpu: 0.0.40
codegen_flags: <defaults>
</compile_context>

<pallas_src>
import math

import jax
import jax.numpy as jnp
from jax.experimental import pallas as pl
from jax.experimental.pallas import tpu as pltpu

_LANE = 128
_TARGET_BLOCK_BYTES = 4 * 1024 * 1024   # ~4 MiB blocks: near HBM roofline, few grid steps
_VMEM_LIMIT_BYTES = 40 * 1024 * 1024    # < v7x 64 MiB/TC physical; ample for ~20 MiB footprint


def _scaler_kernel(x_ref, w_ref, o_ref):
    # Elementwise multiply; w_ref broadcasts over the leading (batch) block dim.
    o_ref[...] = (x_ref[...] * w_ref[...]).astype(o_ref.dtype)


def _grid_and_maps_3d(gn, gb):
    """Grid ordering + index maps for the 3-D [B, rows, 128] layout."""
    if gn > 1:
        # n-tiles outermost, batch innermost: the weight block index only depends
        # on the outer axis, so it is revisited across consecutive batch steps
        # and stays VMEM-resident (never re-streamed from HBM).
        grid = (gn, gb)
        x_map = lambda n, b: (b, n, 0)
        w_map = lambda n, b: (0, n, 0)
    else:
        # Single n-tile: lead with the batch axis so the leading "parallel" grid
        # axis has extent > 1 (v7x megacore balance). Weight is a single block
        # either way, so it stays resident.
        grid = (gb, gn)
        x_map = lambda b, n: (b, n, 0)
        w_map = lambda b, n: (0, n, 0)
    return grid, x_map, w_map


def _grid_and_maps_2d(gn, gb):
    if gn > 1:
        grid = (gn, gb)
        x_map = lambda n, b: (b, n)
        w_map = lambda n, b: (0, n)
    else:
        grid = (gb, gn)
        x_map = lambda b, n: (b, n)
        w_map = lambda b, n: (0, n)
    return grid, x_map, w_map


def scaler_forward(x, weight):
    """x: [B, *in_size], weight: [*in_size]. Returns x * weight (broadcast over B)."""
    B = x.shape[0]
    in_size = tuple(x.shape[1:])
    assert weight.shape == in_size, (weight.shape, in_size)

    out_dtype = jnp.promote_types(x.dtype, weight.dtype)
    if x.size == 0:
        return jnp.zeros(x.shape, out_dtype)

    N = math.prod(in_size) if in_size else 1

    # VMEM budget uses the widest participating dtype (x may be narrower than the
    # promoted output); sublane packing factor uses the narrowest streamed dtype.
    itemsize_max = max(jnp.dtype(d).itemsize for d in (x.dtype, weight.dtype, out_dtype))
    itemsize_min = min(jnp.dtype(x.dtype).itemsize, jnp.dtype(out_dtype).itemsize)
    budget_elems = max(8 * _LANE, _TARGET_BLOCK_BYTES // itemsize_max)
    sublane = max(8, 32 // max(itemsize_min, 1))   # 8 (f32), 16 (bf16), 32 (i8/fp8)

    cparams = pltpu.CompilerParams(
        dimension_semantics=("parallel", "parallel"),
        vmem_limit_bytes=_VMEM_LIMIT_BYTES,
    )

    if N % _LANE == 0:
        # ---- lane-dense 3-D layout: x -> [B, rows, 128], w -> [1, rows, 128] ----
        rows = N // _LANE
        x3 = x.reshape(B, rows, _LANE)
        w3 = weight.reshape(1, rows, _LANE)

        row_budget = max(sublane, budget_elems // _LANE)
        if rows <= row_budget:
            tile_rows = rows                               # full feature extent
            tile_b = max(1, min(B, row_budget // rows))    # pack whole contiguous batch rows
        else:
            tile_b = 1
            tile_rows = (row_budget // sublane) * sublane  # multiple of sublane; ragged edge masked

        gb = pl.cdiv(B, tile_b)
        gn = pl.cdiv(rows, tile_rows)
        grid, x_map, w_map = _grid_and_maps_3d(gn, gb)

        out = pl.pallas_call(
            _scaler_kernel,
            out_shape=jax.ShapeDtypeStruct((B, rows, _LANE), out_dtype),
            grid_spec=pltpu.PrefetchScalarGridSpec(
                num_scalar_prefetch=0,
                grid=grid,
                in_specs=[
                    pl.BlockSpec((tile_b, tile_rows, _LANE), x_map),
                    pl.BlockSpec((1, tile_rows, _LANE), w_map),
                ],
                out_specs=pl.BlockSpec((tile_b, tile_rows, _LANE), x_map),
            ),
            compiler_params=cparams,
        )(x3, w3)
        return out.reshape((B,) + in_size)

    # ---- fallback 2-D layout for ragged N (N % 128 != 0): no padding; the single
    # ragged edge block per axis is handled by Pallas' masked stores. ----
    x2 = x.reshape(B, N)
    w2 = weight.reshape(1, N)

    tile_b = min(B, sublane)                       # == B (full dim) or a multiple of 8
    per_row = max(_LANE, budget_elems // max(tile_b, 1))
    if N <= per_row:
        tile_n = N                                 # full lane extent (legal even if not %128)
    else:
        tile_n = (per_row // _LANE) * _LANE        # multiple of 128; interior stores unmasked

    gb = pl.cdiv(B, tile_b)
    gn = pl.cdiv(N, tile_n)
    grid, x_map, w_map = _grid_and_maps_2d(gn, gb)

    out = pl.pallas_call(
        _scaler_kernel,
        out_shape=jax.ShapeDtypeStruct((B, N), out_dtype),
        grid_spec=pltpu.PrefetchScalarGridSpec(
            num_scalar_prefetch=0,
            grid=grid,
            in_specs=[
                pl.BlockSpec((tile_b, tile_n), x_map),
                pl.BlockSpec((1, tile_n), w_map),
            ],
            out_specs=pl.BlockSpec((tile_b, tile_n), x_map),
        ),
        compiler_params=cparams,
    )(x2, w2)
    return out.reshape((B,) + in_size)


if __name__ == "__main__":
    key = jax.random.PRNGKey(0)
    B, C, H, W = 2, 4, 16, 16  # x: [B, C, H, W]; in_size = (C, H, W)

    kx, kw = jax.random.split(key)
    x = jax.random.normal(kx, (B, C, H, W), dtype=jnp.float32)

    # Module init is torch.ones(*in_size); perturb deterministically so the
    # per-element scale behaviour is actually exercised.
    weight = jnp.ones((C, H, W), dtype=jnp.float32) + 0.01 * jax.random.normal(
        kw, (C, H, W), dtype=jnp.float32
    )

    out = scaler_forward(x, weight)
    out = jax.block_until_ready(out)

    ref = x * weight[None, ...]
    assert out.shape == x.shape, (out.shape, x.shape)
    assert out.dtype == jnp.promote_types(x.dtype, weight.dtype)
    assert jnp.allclose(out, ref, atol=1e-6, rtol=1e-6)
    print("KERNEL_OK")
</pallas_src>

<mosaic_0001>
module attributes {stable_mosaic.version = 11 : i64} {
  func.func @_scaler_kernel(%arg0: i32, %arg1: i32, %arg2: memref<2x8x128xf32, #tpu.memory_space<vmem>>, %arg3: memref<1x8x128xf32, #tpu.memory_space<vmem>>, %arg4: memref<2x8x128xf32, #tpu.memory_space<vmem>>) attributes {dimension_semantics = [#tpu.dimension_semantics<parallel>, #tpu.dimension_semantics<parallel>], iteration_bounds = array<i64: 1, 1>, scalar_prefetch = 0 : i64, scratch_operands = 0 : i64, tpu.core_type = #tpu.core_type<tc>, window_params = [{transform_indices = @transform_0, window_bounds = array<i64: 2, 8, 128>}, {transform_indices = @transform_1, window_bounds = array<i64: 1, 8, 128>}, {transform_indices = @transform_2, window_bounds = array<i64: 2, 8, 128>}]} {
    %c0 = arith.constant 0 : index
    %c0_0 = arith.constant 0 : index
    %c0_1 = arith.constant 0 : index
    %0 = vector.load %arg2[%c0, %c0_0, %c0_1] : memref<2x8x128xf32, #tpu.memory_space<vmem>>, vector<2x8x128xf32>
    %c0_2 = arith.constant 0 : index
    %c0_3 = arith.constant 0 : index
    %c0_4 = arith.constant 0 : index
    %1 = vector.load %arg3[%c0_2, %c0_3, %c0_4] : memref<1x8x128xf32, #tpu.memory_space<vmem>>, vector<1x8x128xf32>
    %2 = vector.broadcast %1 : vector<1x8x128xf32> to vector<2x8x128xf32>
    %3 = arith.mulf %0, %2 : vector<2x8x128xf32>
    %c0_5 = arith.constant 0 : index
    %c0_6 = arith.constant 0 : index
    %c0_7 = arith.constant 0 : index
    %4 = vector.load %arg4[%c0_5, %c0_6, %c0_7] : memref<2x8x128xf32, #tpu.memory_space<vmem>>, vector<2x8x128xf32>
    tpu.vector_store %arg4[%c0_5, %c0_6, %c0_7], %3 {strides = array<i32>} : memref<2x8x128xf32, #tpu.memory_space<vmem>>, vector<2x8x128xf32>,
    return
  }
  func.func @transform_0(%arg0: i32, %arg1: i32) -> (i32, i32, i32) {
    %c0_i32 = arith.constant 0 : i32
    %c0_i32_0 = arith.constant 0 : i32
    return %arg0, %arg1, %c0_i32 : i32, i32, i32
  }
  func.func @transform_1(%arg0: i32, %arg1: i32) -> (i32, i32, i32) {
    %c0_i32 = arith.constant 0 : i32
    %c0_i32_0 = arith.constant 0 : i32
    %c0_i32_1 = arith.constant 0 : i32
    return %c0_i32, %arg1, %c0_i32_0 : i32, i32, i32
  }
  func.func @transform_2(%arg0: i32, %arg1: i32) -> (i32, i32, i32) {
    %c0_i32 = arith.constant 0 : i32
    %c0_i32_0 = arith.constant 0 : i32
    return %arg0, %arg1, %c0_i32 : i32, i32, i32
  }
}

</mosaic_0001>

<llo_original>
// kernel: tpu_custom_call.1
$region0: #{tpu_custom_call.1}
  #allocation0 [shape = 'u32[]', space=smem, size = 0x4, offset = 0x4, fixed_abs, tag = 'smem constant byte address 0x4 - core index']
  #allocation1 [shape = 'u32[144,128]{1,0:T(1,128)}', space=vmem, size = 0x12000, scoped, tag = 'internal scratch']
  %s0 = inlined_call_operand.hbm [shape: f32[2,8,128], index: 0, kind: input, shape index: {}]
  %s1 = inlined_call_operand.hbm [shape: f32[1,8,128], index: 1, kind: input, shape index: {}]
  %s2 = inlined_call_operand.hbm [shape: f32[2,8,128], index: 2, kind: output, shape index: {}]
  %s3 = sld [smem:[#allocation0]]
  $region26: #{tpu_custom_call.1} parent=0
    _
  %s5 = ssub.s32 1, %s3
  %s6 = scalar_select 0, %s5, %s3
  $region1: #{tpu_custom_call.1} parent=0
    #allocation2 [shape = 'u8[8192]{0}', space=vmem, size = 0x2000, scoped, tag = 'input window, operand 0, single buffered']
    #allocation3 [shape = 's32[1]{0}', space=sflag, size = 0x4, scoped, tag = 'scoped memory for tpu_custom_call.1']
    #allocation4 [shape = 's32[1]{0}', space=sflag, size = 0x4, scoped, tag = 'scoped memory for tpu_custom_call.1']
    #allocation5 [shape = 'u8[4096]{0}', space=vmem, size = 0x1000, scoped, tag = 'input window, operand 1, single buffered']
    #allocation6 [shape = 's32[1]{0}', space=sflag, size = 0x4, scoped, tag = 'scoped memory for tpu_custom_call.1']
    #allocation7 [shape = 'u8[8192]{0}', space=vmem, size = 0x2000, scoped, tag = 'output window, operand 0, single buffered']
    %7 = vsyncpa [#allocation3], 0
    %8 = vsyncpa [#allocation6], 0
    %9 = vsyncpa [#allocation4], 0
    // Predicated region
    $region2: #{tpu_custom_call.1} parent=1 // pred_check
      _
    $region3: #{tpu_custom_call.1} parent=1 // pred_check_branch
      %11 = sbr.rel (0) target = $region5
    $region4: #{tpu_custom_call.1} parent=1 // pred_region
      %s13 = ssub.s32 256, 256
      %14 = vsyncadd [#allocation3], %s13
      %s15 = sshll.u32 [#allocation2], 4
      %s16 = int_to_ptr.vmem [resolvable:$true] %s15
      %21 = dma.hbm_to_vmem [thread:$0]  %s0, 256, %s16, [#allocation3], 128, 128, 8
    $region5: #{tpu_custom_call.1} parent=1 // pred_fallthru
      _
    // Predicated region
    $region6: #{tpu_custom_call.1} parent=1 // pred_check
      _
    $region7: #{tpu_custom_call.1} parent=1 // pred_check_branch
      %23 = sbr.rel (0) target = $region9
    $region8: #{tpu_custom_call.1} parent=1 // pred_region
      %s25 = ssub.s32 128, 128
      %26 = vsyncadd [#allocation6], %s25
      %s28 = sshll.u32 [#allocation5], 4
      %s29 = int_to_ptr.vmem [resolvable:$true] %s28
      %31 = dma.hbm_to_vmem [thread:$0]  %s1, 128, %s29, [#allocation6]
    $region9: #{tpu_custom_call.1} parent=1 // pred_fallthru
      _
    // Predicated region
    $region10: #{tpu_custom_call.1} parent=1 // pred_check
      _
    $region11: #{tpu_custom_call.1} parent=1 // pred_check_branch
      %33 = sbr.rel (0) target = $region13
    $region12: #{tpu_custom_call.1} parent=1 // pred_region
      %34 = dma.done [#allocation3], 256
    $region13: #{tpu_custom_call.1} parent=1 // pred_fallthru
      _
    // Predicated region
    $region14: #{tpu_custom_call.1} parent=1 // pred_check
      _
    $region15: #{tpu_custom_call.1} parent=1 // pred_check_branch
      %36 = sbr.rel (0) target = $region17
    $region16: #{tpu_custom_call.1} parent=1 // pred_region
      %37 = dma.done [#allocation6], 128
    $region17: #{tpu_custom_call.1} parent=1 // pred_fallthru
      _
    %v38 = vld [vmem:[#allocation2] sm:$0xff]
    %v39 = vld [vmem:[#allocation2 + $0x8] sm:$0xff]
    %v40 = vld [vmem:[#allocation5] sm:$0xff]
    %v41 = vmul.f32 %v38, %v40
    %v42 = vmul.f32 %v39, %v40
    %43 = vst [vmem:[#allocation7] sm:$0xff] %v41
    %44 = vst [vmem:[#allocation7 + $0x8] sm:$0xff] %v42
    // Predicated region
    $region18: #{tpu_custom_call.1} parent=1 // pred_check
      _
    $region19: #{tpu_custom_call.1} parent=1 // pred_check_branch
      %46 = sbr.rel (0) target = $region21
    $region20: #{tpu_custom_call.1} parent=1 // pred_region
      %s48 = ssub.s32 256, 256
      %49 = vsyncadd [#allocation4], %s48
      %s50 = sshll.u32 [#allocation7], 4
      %s51 = int_to_ptr.vmem [resolvable:$true] %s50
      %56 = dma.vmem_to_hbm [thread:$0]  %s51, 256, %s2, [#allocation4], 128, 128, 8
    $region21: #{tpu_custom_call.1} parent=1 // pred_fallthru
      _
    // Predicated region
    $region22: #{tpu_custom_call.1} parent=1 // pred_check
      _
    $region23: #{tpu_custom_call.1} parent=1 // pred_check_branch
      %58 = sbr.rel (0) target = $region25
    $region24: #{tpu_custom_call.1} parent=1 // pred_region
      %59 = dma.done [#allocation4], 256
    $region25: #{tpu_custom_call.1} parent=1 // pred_fallthru
      _
    %60 = vsyncpa [#allocation3], 1
    %61 = vsyncpa [#allocation6], 1
    %62 = vsyncpa [#allocation4], 1

</llo_original>
